<compile_context>
chip_gen: v6e
topology: v6e:2x2x1
jax: 0.10.0
libtpu: 0.0.40
codegen_flags: <defaults>
</compile_context>

<pallas_src>
import functools

import jax
import jax.numpy as jnp
from jax.experimental import pallas as pl
from jax.experimental.pallas import tpu as pltpu


def _round_up(x, m):
    return (x + m - 1) // m * m


def _gcn_kernel(x_ref, w_ref, b_ref, s_ref, lb_ref, o_ref, *, neg_slope):
    # x_ref : (tn, F)     natural-layout activation tile (matmul_dtype)
    # w_ref : (cb*H, F)   EntropyLinear weights with alpha pre-folded (matmul_dtype)
    # b_ref : (cb*H, 1)   EntropyLinear bias (f32)
    # s_ref : (cb, cb*H)  block-diagonal final-Linear weights, S[c, c*H + h] = lw[h] (f32)
    # lb_ref: (1,)        final-Linear bias scalar (SMEM, f32)
    # o_ref : (cb, tn)    lane-dense output block (classes on sublanes, N on lanes)

    # Main MXU matmul in NT form (contract on x's last dim) -> no transpose of x anywhere.
    h = jax.lax.dot_general(w_ref[...], x_ref[...],
                            (((1,), (1,)), ((), ())),
                            preferred_element_type=jnp.float32)      # (cb*H, tn) f32
    h = h + b_ref[...]                                               # EntropyLinear bias
    h = jnp.where(h > 0, h, neg_slope * h)                           # leaky_relu (f32, VPU)

    # Final Linear(H, 1) for all cb classes at once as a second small MXU matmul
    # (moves the H reduction off the VPU/XLU onto the under-used MXU).
    out = jax.lax.dot_general(s_ref[...], h,
                              (((1,), (0,)), ((), ())),
                              preferred_element_type=jnp.float32)    # (cb, tn) f32
    o_ref[...] = (out + lb_ref[0]).astype(o_ref.dtype)


def gcn_forward(x, edge_index, params, *, temperature=0.6, neg_slope=0.01,
                tile_n_max=None, class_block=None, matmul_dtype=jnp.bfloat16,
                vmem_limit_bytes=None):
    del edge_index  # unused by the reference forward (kept for API parity)
    w, b = params["lens_w"], params["lens_b"]                  # (C, H, F), (C, 1, H)
    lw, lb = params["lin_w"], params["lin_b"]                  # (1, H), (1,)
    N, F = x.shape
    C, H, F_w = w.shape
    assert F_w == F

    # --- tiny per-class attention (EntropyLinear alpha), folded into the weights ----------
    gamma = jnp.sum(jnp.abs(w), axis=1)                        # (C, F)   L1 over H
    alpha = jax.nn.softmax(gamma / temperature, axis=1)
    alpha_norm = alpha / jnp.max(alpha, axis=1, keepdims=True) # (C, F)
    w_scaled = (w * alpha_norm[:, None, :]).reshape(C * H, F).astype(matmul_dtype)

    b_col = b.reshape(C * H, 1).astype(jnp.float32)            # bias[c, 0, h] -> row c*H + h
    lb_s = lb.reshape(1).astype(jnp.float32)                   # scalar -> SMEM

    # --- class blocking (default: all classes in one MXU matmul) --------------------------
    if class_block is None:
        class_block = C
    cb = class_block
    assert C % cb == 0
    assert cb == C or cb % 8 == 0, "class block must be full C or a multiple of 8"

    # Block-diagonal final-Linear weights for the MXU epilogue: S[c, c*H + h] = lw[h].
    S = jnp.kron(jnp.eye(cb, dtype=jnp.float32),
                 lw.reshape(1, H).astype(jnp.float32))         # (cb, cb*H)

    # --- generation-aware tiling / VMEM budget ---------------------------------------------
    try:
        info = pltpu.get_tpu_info()
        vmem_cap = getattr(info, "vmem_capacity_bytes", 64 * 1024 * 1024)
    except Exception:  # be conservative if the query is unavailable
        vmem_cap = 64 * 1024 * 1024
    big_vmem = vmem_cap >= 100 * 1024 * 1024                   # v5e / v6e (128 MiB) vs v7x (64 MiB)
    if vmem_limit_bytes is None:
        vmem_limit_bytes = 96 * 1024 * 1024 if big_vmem else 48 * 1024 * 1024

    dt_bytes = jnp.dtype(matmul_dtype).itemsize
    f_lanes = _round_up(F, 128)                                # lane-padded minor dim
    # Fixed (N-independent), double-buffered VMEM residents.
    fixed = 2 * cb * H * f_lanes * dt_bytes                    # folded weights
    fixed += 2 * cb * H * 128 * 4                              # bias column (lane-padded)
    fixed += 2 * max(cb, 8) * _round_up(cb * H, 128) * 4       # S epilogue matrix
    per_row = 2 * f_lanes * dt_bytes + 2 * cb * 4              # x tile + out tile, per N row
    budget = int(0.7 * vmem_limit_bytes) - fixed
    tn_budget = max(128, (budget // max(per_row, 1)) // 128 * 128)
    tn_hw_cap = 2048 if big_vmem else 1024
    if tile_n_max is None:
        tile_n_max = tn_hw_cap

    n_pad_128 = _round_up(N, 128)
    tn = min(tile_n_max, tn_budget, n_pad_128)
    # v7x megacore: when the class axis has a single block, make sure the N axis has >= 2
    # steps (if N allows it) so the parallel grid can be sharded across both TensorCores.
    if C // cb == 1 and n_pad_128 > 128:
        tn = min(tn, max(128, _round_up((n_pad_128 // 128 + 1) // 2 * 128, 128)))
    n_pad = _round_up(N, tn)

    x_p = x
    if n_pad != N:
        x_p = jnp.pad(x_p, ((0, n_pad - N), (0, 0)))
    x_p = x_p.astype(matmul_dtype)                             # natural (N, F) layout, no transpose

    grid = (n_pad // tn, C // cb)                              # N outer (x streamed once), classes inner

    kernel = functools.partial(_gcn_kernel, neg_slope=float(neg_slope))

    out_cn = pl.pallas_call(
        kernel,
        out_shape=jax.ShapeDtypeStruct((C, n_pad), jnp.float32),
        grid_spec=pltpu.PrefetchScalarGridSpec(
            num_scalar_prefetch=0,
            grid=grid,
            in_specs=[
                pl.BlockSpec((tn, F), lambda n, c: (n, 0)),          # x tile, natural layout
                pl.BlockSpec((cb * H, F), lambda n, c: (c, 0)),      # alpha-folded weights
                pl.BlockSpec((cb * H, 1), lambda n, c: (c, 0)),      # EntropyLinear bias
                pl.BlockSpec((cb, cb * H), lambda n, c: (0, 0)),     # block-diag final Linear
                pl.BlockSpec(memory_space=pltpu.MemorySpace.SMEM),   # final Linear bias scalar
            ],
            out_specs=pl.BlockSpec((cb, tn), lambda n, c: (c, n)),   # lane-dense (classes, N)
        ),
        compiler_params=pltpu.CompilerParams(
            dimension_semantics=("parallel", "parallel"),  # independent steps; megacore on v7x
            vmem_limit_bytes=int(vmem_limit_bytes),
        ),
    )(x_p, w_scaled, b_col, S, lb_s)

    # PyTorch module returns (N, num_classes, 1); padded N columns are sliced off here.
    return out_cn[:, :N].T[:, :, None]


def gcn_reference(x, params, *, temperature=0.6, neg_slope=0.01):
    """Pure-JAX reference mirroring torch_explain EntropyLinear + GCN.forward."""
    w, b = params["lens_w"], params["lens_b"]
    lw, lb = params["lin_w"], params["lin_b"]
    gamma = jnp.sum(jnp.abs(w), axis=1)                        # (C, F)
    alpha = jax.nn.softmax(gamma / temperature, axis=1)
    alpha_norm = alpha / jnp.max(alpha, axis=1, keepdims=True) # (C, F)
    xw = x[None, :, :] * alpha_norm[:, None, :]                # (C, N, F)
    h = jnp.einsum("cnf,chf->cnh", xw, w) + b                  # (C, N, H)
    h = jnp.transpose(h, (1, 0, 2))                            # (N, C, H)
    h = jnp.where(h > 0, h, neg_slope * h)
    return jnp.einsum("nch,oh->nco", h, lw) + lb               # (N, C, 1)


if __name__ == "__main__":
    # Small shapes consistent with the module's forward.
    N, F, H, C = 8, 16, 32, 4
    TEMPERATURE = 0.6

    key = jax.random.PRNGKey(0)
    k_x, k_w, k_b, k_lw, k_lb, k_e = jax.random.split(key, 6)

    x = jax.random.normal(k_x, (N, F), jnp.float32)
    edge_index = jax.random.randint(k_e, (2, 10), 0, N, jnp.int32)  # unused, API parity

    params = {
        "lens_w": 0.2 * jax.random.normal(k_w, (C, H, F), jnp.float32),
        "lens_b": 0.1 * jax.random.normal(k_b, (C, 1, H), jnp.float32),
        "lin_w": 0.2 * jax.random.normal(k_lw, (1, H), jnp.float32),
        "lin_b": 0.1 * jax.random.normal(k_lb, (1,), jnp.float32),
    }

    ref = gcn_reference(x, params, temperature=TEMPERATURE)

    # Default (bf16 matmul operands, f32 accumulation / epilogue): loose tolerance.
    out_bf16 = gcn_forward(x, edge_index, params, temperature=TEMPERATURE)
    out_bf16 = jax.block_until_ready(out_bf16)
    assert out_bf16.shape == (N, C, 1), out_bf16.shape
    assert jnp.allclose(out_bf16, ref, atol=5e-2, rtol=5e-2), \
        f"bf16 max abs err {jnp.max(jnp.abs(out_bf16 - ref))}"

    # f32 path: tight correctness check.
    out_f32 = gcn_forward(x, edge_index, params, temperature=TEMPERATURE,
                          matmul_dtype=jnp.float32)
    out_f32 = jax.block_until_ready(out_f32)
    assert out_f32.shape == (N, C, 1), out_f32.shape
    assert jnp.allclose(out_f32, ref, atol=1e-4, rtol=1e-4), \
        f"f32 max abs err {jnp.max(jnp.abs(out_f32 - ref))}"

    print("KERNEL_OK")
</pallas_src>

<mosaic_0001>
module attributes {stable_mosaic.version = 11 : i64} {
  func.func @_gcn_kernel(%arg0: i32, %arg1: i32, %arg2: memref<128x16xbf16, #tpu.memory_space<vmem>>, %arg3: memref<128x16xbf16, #tpu.memory_space<vmem>>, %arg4: memref<128x1xf32, #tpu.memory_space<vmem>>, %arg5: memref<4x128xf32, #tpu.memory_space<vmem>>, %arg6: memref<1xf32, #tpu.memory_space<smem>>, %arg7: memref<4x128xf32, #tpu.memory_space<vmem>>) attributes {dimension_semantics = [#tpu.dimension_semantics<parallel>, #tpu.dimension_semantics<parallel>], iteration_bounds = array<i64: 1, 1>, scalar_prefetch = 0 : i64, scratch_operands = 0 : i64, tpu.core_type = #tpu.core_type<tc>, window_params = [{transform_indices = @transform_0, window_bounds = array<i64: 128, 16>}, {transform_indices = @transform_1, window_bounds = array<i64: 128, 16>}, {transform_indices = @transform_2, window_bounds = array<i64: 128, 1>}, {pipeline_mode = #tpu.pipeline_mode<synchronous>, transform_indices = @transform_3, window_bounds = array<i64: 4, 128>}, {transform_indices = @transform_4, window_bounds = array<i64: 1>}, {transform_indices = @transform_5, window_bounds = array<i64: 4, 128>}]} {
    %c0 = arith.constant 0 : index
    %c0_0 = arith.constant 0 : index
    %0 = vector.load %arg3[%c0, %c0_0] : memref<128x16xbf16, #tpu.memory_space<vmem>>, vector<128x16xbf16>
    %c0_1 = arith.constant 0 : index
    %c0_2 = arith.constant 0 : index
    %1 = vector.load %arg2[%c0_1, %c0_2] : memref<128x16xbf16, #tpu.memory_space<vmem>>, vector<128x16xbf16>
    %cst = arith.constant dense<0.000000e+00> : vector<128x128xf32>
    %2 = tpu.matmul %0, %1, %cst {dimension_numbers = #tpu.dot_dimension_numbers<[1], [1], [0], [0], [0, 0, 1, 0], [], []>} : vector<128x16xbf16>, vector<128x16xbf16>, vector<128x128xf32> -> vector<128x128xf32>
    %c0_3 = arith.constant 0 : index
    %c0_4 = arith.constant 0 : index
    %3 = vector.load %arg4[%c0_3, %c0_4] : memref<128x1xf32, #tpu.memory_space<vmem>>, vector<128x1xf32>
    %4 = vector.broadcast %3 : vector<128x1xf32> to vector<128x128xf32>
    %5 = arith.addf %2, %4 : vector<128x128xf32>
    %cst_5 = arith.constant 0.000000e+00 : f32
    %6 = vector.broadcast %cst_5 : f32 to vector<128x128xf32>
    %7 = arith.cmpf ogt, %5, %6 : vector<128x128xf32>
    %cst_6 = arith.constant 0.00999999977 : f32
    %8 = vector.broadcast %cst_6 : f32 to vector<128x128xf32>
    %9 = arith.mulf %8, %5 : vector<128x128xf32>
    %10 = arith.select %7, %5, %9 : vector<128x128xi1>, vector<128x128xf32>
    %c0_7 = arith.constant 0 : index
    %c0_8 = arith.constant 0 : index
    %11 = vector.load %arg5[%c0_7, %c0_8] : memref<4x128xf32, #tpu.memory_space<vmem>>, vector<4x128xf32>
    %cst_9 = arith.constant dense<0.000000e+00> : vector<4x128xf32>
    %12 = tpu.matmul %11, %10, %cst_9 {dimension_numbers = #tpu.dot_dimension_numbers<[1], [0], [0], [1], [0, 0, 1, 1], [], []>} : vector<4x128xf32>, vector<128x128xf32>, vector<4x128xf32> -> vector<4x128xf32>
    %c0_10 = arith.constant 0 : index
    %13 = memref.load %arg6[%c0_10] : memref<1xf32, #tpu.memory_space<smem>>
    %14 = vector.broadcast %13 : f32 to vector<4x128xf32>
    %15 = arith.addf %12, %14 : vector<4x128xf32>
    %c0_11 = arith.constant 0 : index
    %c0_12 = arith.constant 0 : index
    %16 = vector.load %arg7[%c0_11, %c0_12] : memref<4x128xf32, #tpu.memory_space<vmem>>, vector<4x128xf32>
    tpu.vector_store %arg7[%c0_11, %c0_12], %15 {strides = array<i32>} : memref<4x128xf32, #tpu.memory_space<vmem>>, vector<4x128xf32>,
    return
  }
  func.func @transform_0(%arg0: i32, %arg1: i32) -> (i32, i32) {
    %c0_i32 = arith.constant 0 : i32
    %c0_i32_0 = arith.constant 0 : i32
    return %arg0, %c0_i32 : i32, i32
  }
  func.func @transform_1(%arg0: i32, %arg1: i32) -> (i32, i32) {
    %c0_i32 = arith.constant 0 : i32
    %c0_i32_0 = arith.constant 0 : i32
    return %arg1, %c0_i32 : i32, i32
  }
  func.func @transform_2(%arg0: i32, %arg1: i32) -> (i32, i32) {
    %c0_i32 = arith.constant 0 : i32
    %c0_i32_0 = arith.constant 0 : i32
    return %arg1, %c0_i32 : i32, i32
  }
  func.func @transform_3(%arg0: i32, %arg1: i32) -> (i32, i32) {
    %c0_i32 = arith.constant 0 : i32
    %c0_i32_0 = arith.constant 0 : i32
    %c0_i32_1 = arith.constant 0 : i32
    return %c0_i32, %c0_i32_0 : i32, i32
  }
  func.func @transform_4(%arg0: i32, %arg1: i32) -> i32 {
    %c0_i32 = arith.constant 0 : i32
    %c0_i32_0 = arith.constant 0 : i32
    return %c0_i32 : i32
  }
  func.func @transform_5(%arg0: i32, %arg1: i32) -> (i32, i32) {
    %c0_i32 = arith.constant 0 : i32
    return %arg1, %arg0 : i32, i32
  }
}

</mosaic_0001>

<llo_original>
// kernel: tpu_custom_call.1
$region0: #{tpu_custom_call.1}
  #allocation0 [shape = 'u32[]', space=smem, size = 0x4, offset = 0x4, fixed_abs, tag = 'smem constant byte address 0x4 - core index']
  #allocation1 [shape = 'u32[144,128]{1,0:T(1,128)}', space=vmem, size = 0x12000, scoped, tag = 'internal scratch']
  #allocation2 [shape = 'f32[1]{0:T(128)S(6)}', space=smem, size = 0x200, scoped, tag = 'scoped memory for tpu_custom_call.1']
  %s0 = inlined_call_operand.vmem [shape: bf16[128,16], index: 0, kind: input, shape index: {}]
  %s1 = inlined_call_operand.vmem [shape: bf16[128,16], index: 1, kind: input, shape index: {}]
  %s2 = inlined_call_operand.vmem [shape: f32[128,1], index: 2, kind: input, shape index: {}]
  %s3 = inlined_call_operand.vmem [shape: f32[4,128], index: 3, kind: input, shape index: {}]
  %s4 = inlined_call_operand.<no memory space> [shape: f32[1], index: 4, kind: input, shape index: {}]
  %s5 = inlined_call_operand.hbm [shape: f32[4,128], index: 5, kind: output, shape index: {}]
  %s6 = sld [smem:[#allocation0]]
  $region30: #{tpu_custom_call.1} parent=0
    _
  %s8 = ssub.s32 1, %s6
  %s9 = scalar_select 0, %s8, %s6
  %10 = sst [smem:[#allocation2]] %s4
  $region1: #{tpu_custom_call.1} parent=0
    #allocation3 [shape = 'u8[2048]{0}', space=vmem, size = 0x800, scoped, tag = 'output window, operand 0, single buffered']
    #allocation4 [shape = 's32[1]{0}', space=sflag, size = 0x4, scoped, tag = 'scoped memory for tpu_custom_call.1']
    %11 = vsyncpa [#allocation4], 0
    // Predicated region
    $region2: #{tpu_custom_call.1} parent=1 // pred_check
      _
    $region3: #{tpu_custom_call.1} parent=1 // pred_check_branch
      %13 = sbr.rel (0) target = $region5
    $region4: #{tpu_custom_call.1} parent=1 // pred_region
      _
    $region5: #{tpu_custom_call.1} parent=1 // pred_fallthru
      _
    // Predicated region
    $region6: #{tpu_custom_call.1} parent=1 // pred_check
      _
    $region7: #{tpu_custom_call.1} parent=1 // pred_check_branch
      %15 = sbr.rel (0) target = $region9
    $region8: #{tpu_custom_call.1} parent=1 // pred_region
      _
    $region9: #{tpu_custom_call.1} parent=1 // pred_fallthru
      _
    // Predicated region
    $region10: #{tpu_custom_call.1} parent=1 // pred_check
      _
    $region11: #{tpu_custom_call.1} parent=1 // pred_check_branch
      %17 = sbr.rel (0) target = $region13
    $region12: #{tpu_custom_call.1} parent=1 // pred_region
      _
    $region13: #{tpu_custom_call.1} parent=1 // pred_fallthru
      _
    // Predicated region
    $region14: #{tpu_custom_call.1} parent=1 // pred_check
      _
    $region15: #{tpu_custom_call.1} parent=1 // pred_check_branch
      %19 = sbr.rel (0) target = $region17
    $region16: #{tpu_custom_call.1} parent=1 // pred_region
      _
    $region17: #{tpu_custom_call.1} parent=1 // pred_fallthru
      _
    // Predicated region
    $region18: #{tpu_custom_call.1} parent=1 // pred_check
      _
    $region19: #{tpu_custom_call.1} parent=1 // pred_check_branch
      %21 = sbr.rel (0) target = $region21
    $region20: #{tpu_custom_call.1} parent=1 // pred_region
      _
    $region21: #{tpu_custom_call.1} parent=1 // pred_fallthru
      _
    %v23 = vld [vmem:[%s1] sm:$0xf]
    %v24 = vld [vmem:[%s1 + $0x4] sm:$0xf]
    %v25 = vld [vmem:[%s1 + $0x8] sm:$0xf]
    %v26 = vld [vmem:[%s1 + $0xc] sm:$0xf]
    %v27 = vld [vmem:[%s1 + $0x10] sm:$0xf]
    %v28 = vld [vmem:[%s1 + $0x14] sm:$0xf]
    %v29 = vld [vmem:[%s1 + $0x18] sm:$0xf]
    %v30 = vld [vmem:[%s1 + $0x1c] sm:$0xf]
    %v31 = vld [vmem:[%s1 + $0x20] sm:$0xf]
    %v32 = vld [vmem:[%s1 + $0x24] sm:$0xf]
    %v33 = vld [vmem:[%s1 + $0x28] sm:$0xf]
    %v34 = vld [vmem:[%s1 + $0x2c] sm:$0xf]
    %v35 = vld [vmem:[%s1 + $0x30] sm:$0xf]
    %v36 = vld [vmem:[%s1 + $0x34] sm:$0xf]
    %v37 = vld [vmem:[%s1 + $0x38] sm:$0xf]
    %v38 = vld [vmem:[%s1 + $0x3c] sm:$0xf]
    %v39 = vld [vmem:[%s0] sm:$0xf]
    %v40 = vld [vmem:[%s0 + $0x4] sm:$0xf]
    %v41 = vld [vmem:[%s0 + $0x8] sm:$0xf]
    %v42 = vld [vmem:[%s0 + $0xc] sm:$0xf]
    %v43 = vld [vmem:[%s0 + $0x10] sm:$0xf]
    %v44 = vld [vmem:[%s0 + $0x14] sm:$0xf]
    %v45 = vld [vmem:[%s0 + $0x18] sm:$0xf]
    %v46 = vld [vmem:[%s0 + $0x1c] sm:$0xf]
    %v47 = vld [vmem:[%s0 + $0x20] sm:$0xf]
    %v48 = vld [vmem:[%s0 + $0x24] sm:$0xf]
    %v49 = vld [vmem:[%s0 + $0x28] sm:$0xf]
    %v50 = vld [vmem:[%s0 + $0x2c] sm:$0xf]
    %v51 = vld [vmem:[%s0 + $0x30] sm:$0xf]
    %v52 = vld [vmem:[%s0 + $0x34] sm:$0xf]
    %v53 = vld [vmem:[%s0 + $0x38] sm:$0xf]
    %v54 = vld [vmem:[%s0 + $0x3c] sm:$0xf]
    %v55 = vld [vmem:[%s2] sm:$0xff]
    %v56 = vld [vmem:[%s2 + $0x8] sm:$0xff]
    %v57 = vld [vmem:[%s2 + $0x10] sm:$0xff]
    %v58 = vld [vmem:[%s2 + $0x18] sm:$0xff]
    %v59 = vld [vmem:[%s2 + $0x20] sm:$0xff]
    %v60 = vld [vmem:[%s2 + $0x28] sm:$0xff]
    %v61 = vld [vmem:[%s2 + $0x30] sm:$0xff]
    %v62 = vld [vmem:[%s2 + $0x38] sm:$0xff]
    %v63 = vld [vmem:[%s2 + $0x40] sm:$0xff]
    %v64 = vld [vmem:[%s2 + $0x48] sm:$0xff]
    %v65 = vld [vmem:[%s2 + $0x50] sm:$0xff]
    %v66 = vld [vmem:[%s2 + $0x58] sm:$0xff]
    %v67 = vld [vmem:[%s2 + $0x60] sm:$0xff]
    %v68 = vld [vmem:[%s2 + $0x68] sm:$0xff]
    %v69 = vld [vmem:[%s2 + $0x70] sm:$0xff]
    %v70 = vld [vmem:[%s2 + $0x78] sm:$0xff]
    %72 = vset.pattern.permute.xlu0 0
    %73 = vperm.xlu0 %72, %v55
    %v74 = vpop.permute.xlu0 %73
    %77 = vset.pattern.permute.xlu0 0
    %78 = vperm.xlu0 %77, %v56
    %v79 = vpop.permute.xlu0 %78
    %82 = vset.pattern.permute.xlu0 0
    %83 = vperm.xlu0 %82, %v57
    %v84 = vpop.permute.xlu0 %83
    %87 = vset.pattern.permute.xlu0 0
    %88 = vperm.xlu0 %87, %v58
    %v89 = vpop.permute.xlu0 %88
    %92 = vset.pattern.permute.xlu0 0
    %93 = vperm.xlu0 %92, %v59
    %v94 = vpop.permute.xlu0 %93
    %97 = vset.pattern.permute.xlu0 0
    %98 = vperm.xlu0 %97, %v60
    %v99 = vpop.permute.xlu0 %98
    %102 = vset.pattern.permute.xlu0 0
    %103 = vperm.xlu0 %102, %v61
    %v104 = vpop.permute.xlu0 %103
    %107 = vset.pattern.permute.xlu0 0
    %108 = vperm.xlu0 %107, %v62
    %v109 = vpop.permute.xlu0 %108
    %112 = vset.pattern.permute.xlu0 0
    %113 = vperm.xlu0 %112, %v63
    %v114 = vpop.permute.xlu0 %113
    %117 = vset.pattern.permute.xlu0 0
    %118 = vperm.xlu0 %117, %v64
    %v119 = vpop.permute.xlu0 %118
    %122 = vset.pattern.permute.xlu0 0
    %123 = vperm.xlu0 %122, %v65
    %v124 = vpop.permute.xlu0 %123
    %127 = vset.pattern.permute.xlu0 0
    %128 = vperm.xlu0 %127, %v66
    %v129 = vpop.permute.xlu0 %128
    %132 = vset.pattern.permute.xlu0 0
    %133 = vperm.xlu0 %132, %v67
    %v134 = vpop.permute.xlu0 %133
    %137 = vset.pattern.permute.xlu0 0
    %138 = vperm.xlu0 %137, %v68
    %v139 = vpop.permute.xlu0 %138
    %142 = vset.pattern.permute.xlu0 0
    %143 = vperm.xlu0 %142, %v69
    %v144 = vpop.permute.xlu0 %143
    %147 = vset.pattern.permute.xlu0 0
    %148 = vperm.xlu0 %147, %v70
    %v149 = vpop.permute.xlu0 %148
    %v167 = vunpack.c.l.b16 %v23
    %v168 = vunpack.c.l.b16 %v24
    %v169 = vunpack.c.l.b16 %v25
    %v170 = vunpack.c.l.b16 %v26
    %v171 = vunpack.c.l.b16 %v27
    %v172 = vunpack.c.l.b16 %v28
    %v173 = vunpack.c.l.b16 %v29
    %v174 = vunpack.c.l.b16 %v30
    %v175 = vunpack.c.l.b16 %v31
    %v176 = vunpack.c.l.b16 %v32
    %v177 = vunpack.c.l.b16 %v33
    %v178 = vunpack.c.l.b16 %v34
    %v179 = vunpack.c.l.b16 %v35
    %v180 = vunpack.c.l.b16 %v36
    %v181 = vunpack.c.l.b16 %v37
    %v182 = vunpack.c.l.b16 %v38
    %v183 = vpack.c.b16 %v168, %v167
    %v184 = vpack.c.b16 %v170, %v169
    %v185 = vpack.c.b16 %v172, %v171
    %v186 = vpack.c.b16 %v174, %v173
    %v187 = vpack.c.b16 %v176, %v175
    %v188 = vpack.c.b16 %v178, %v177
    %v189 = vpack.c.b16 %v180, %v179
    %v190 = vpack.c.b16 %v182, %v181
    %v207 = vunpack.c.l.b16 %v39
    %v208 = vunpack.c.l.b16 %v40
    %v209 = vunpack.c.l.b16 %v41
    %v210 = vunpack.c.l.b16 %v42
    %v211 = vunpack.c.l.b16 %v43
    %v212 = vunpack.c.l.b16 %v44
    %v213 = vunpack.c.l.b16 %v45
    %v214 = vunpack.c.l.b16 %v46
    %v215 = vunpack.c.l.b16 %v47
    %v216 = vunpack.c.l.b16 %v48
    %v217 = vunpack.c.l.b16 %v49
    %v218 = vunpack.c.l.b16 %v50
    %v219 = vunpack.c.l.b16 %v51
    %v220 = vunpack.c.l.b16 %v52
    %v221 = vunpack.c.l.b16 %v53
    %v222 = vunpack.c.l.b16 %v54
    %v223 = vpack.c.b16 %v208, %v207
    %v224 = vpack.c.b16 %v210, %v209
    %v225 = vpack.c.b16 %v212, %v211
    %v226 = vpack.c.b16 %v214, %v213
    %v227 = vpack.c.b16 %v216, %v215
    %v228 = vpack.c.b16 %v218, %v217
    %v229 = vpack.c.b16 %v220, %v219
    %v230 = vpack.c.b16 %v222, %v221
    %vm231 = vcmask 130048
    %v233 = vsel %vm231, %v183, 0
    %v236 = vsel %vm231, %v184, 0
    %v239 = vsel %vm231, %v185, 0
    %v242 = vsel %vm231, %v186, 0
    %v245 = vsel %vm231, %v187, 0
    %v248 = vsel %vm231, %v188, 0
    %v251 = vsel %vm231, %v189, 0
    %v254 = vsel %vm231, %v190, 0
    %v257 = vsel %vm231, %v223, 0
    %v260 = vsel %vm231, %v224, 0
    %v263 = vsel %vm231, %v225, 0
    %v266 = vsel %vm231, %v226, 0
    %v269 = vsel %vm231, %v227, 0
    %v272 = vsel %vm231, %v228, 0
    %v275 = vsel %vm231, %v229, 0
    %v278 = vsel %vm231, %v230, 0
    %280 = vmatprep.subr.bf16.mxu0 0
    %281 = vmatpush1.bf16.xpose.msra.mxu0 %v278
    %282 = vmatprep.subr.bf16.mxu0 0
    %283 = vmatpush1.bf16.xpose.msra.mxu0 %v275
    %284 = vmatprep.subr.bf16.mxu0 0
    %285 = vmatpush1.bf16.xpose.msra.mxu0 %v272
    %286 = vmatprep.subr.bf16.mxu0 0
    %287 = vmatpush1.bf16.xpose.msra.mxu0 %v269
    %288 = vmatprep.subr.bf16.mxu0 0
    %289 = vmatpush1.bf16.xpose.msra.mxu0 %v266
    %290 = vmatprep.subr.bf16.mxu0 0
    %291 = vmatpush1.bf16.xpose.msra.mxu0 %v263
    %292 = vmatprep.subr.bf16.mxu0 0
    %293 = vmatpush1.bf16.xpose.msra.mxu0 %v260
    %294 = vmatprep.subr.bf16.mxu0 0
    %295 = vmatpush1.bf16.xpose.msra.mxu0 %v257
    %296 = vmatprep.subr.bf16.mxu0 0
    %297 = vmatpush2.bf16.xpose.msra.mxu0 0
    %298 = vmatprep.subr.bf16.mxu0 0
    %299 = vmatpush2.bf16.xpose.msra.mxu0 0
    %300 = vmatprep.subr.bf16.mxu0 0
    %301 = vmatpush2.bf16.xpose.msra.mxu0 0
    %302 = vmatprep.subr.bf16.mxu0 0
    %303 = vmatpush2.bf16.xpose.msra.mxu0 0
    %304 = vmatprep.subr.bf16.mxu0 0
    %305 = vmatpush2.bf16.xpose.msra.mxu0 0
    %306 = vmatprep.subr.bf16.mxu0 0
    %307 = vmatpush2.bf16.xpose.msra.mxu0 0
    %308 = vmatprep.subr.bf16.mxu0 0
    %309 = vmatpush2.bf16.xpose.msra.mxu0 0
    %310 = vmatprep.subr.bf16.mxu0 0
    %311 = vmatpush2.bf16.xpose.msra.mxu0 0
    %312 = vmatprep.mubr.bf16.mxu0 0
    %313 = vmatmul.mubr.bf16.gmra.mxu0 %v233
    %v314 = vpop.f32.mrf.mxu0
    %v315 = vadd.f32 %v74, %v314
    %v316 = vpop.f32.mrf.mxu0
    %v317 = vpop.f32.mrf.mxu0
    %v318 = vadd.f32 %v79, %v317
    %v319 = vpop.f32.mrf.mxu0
    %320 = vmatprep.mubr.bf16.mxu0 0
    %321 = vmatmul.mubr.bf16.gmra.mxu0 %v236
    %v322 = vpop.f32.mrf.mxu0
    %v323 = vadd.f32 %v84, %v322
    %v324 = vpop.f32.mrf.mxu0
    %v325 = vpop.f32.mrf.mxu0
    %v326 = vadd.f32 %v89, %v325
    %v327 = vpop.f32.mrf.mxu0
    %328 = vmatprep.mubr.bf16.mxu0 0
    %329 = vmatmul.mubr.bf16.gmra.mxu0 %v239
    %v330 = vpop.f32.mrf.mxu0
    %v331 = vadd.f32 %v94, %v330
    %v332 = vpop.f32.mrf.mxu0
    %v333 = vpop.f32.mrf.mxu0
    %v334 = vadd.f32 %v99, %v333
    %v335 = vpop.f32.mrf.mxu0
    %336 = vmatprep.mubr.bf16.mxu0 0
    %337 = vmatmul.mubr.bf16.gmra.mxu0 %v242
    %v338 = vpop.f32.mrf.mxu0
    %v339 = vadd.f32 %v104, %v338
    %v340 = vpop.f32.mrf.mxu0
    %v341 = vpop.f32.mrf.mxu0
    %v342 = vadd.f32 %v109, %v341
    %v343 = vpop.f32.mrf.mxu0
    %344 = vmatprep.mubr.bf16.mxu0 0
    %345 = vmatmul.mubr.bf16.gmra.mxu0 %v245
    %v346 = vpop.f32.mrf.mxu0
    %v347 = vadd.f32 %v114, %v346
    %v348 = vpop.f32.mrf.mxu0
    %v349 = vpop.f32.mrf.mxu0
    %v350 = vadd.f32 %v119, %v349
    %v351 = vpop.f32.mrf.mxu0
    %352 = vmatprep.mubr.bf16.mxu0 0
    %353 = vmatmul.mubr.bf16.gmra.mxu0 %v248
    %v354 = vpop.f32.mrf.mxu0
    %v355 = vadd.f32 %v124, %v354
    %v356 = vpop.f32.mrf.mxu0
    %v357 = vpop.f32.mrf.mxu0
    %v358 = vadd.f32 %v129, %v357
    %v359 = vpop.f32.mrf.mxu0
    %360 = vmatprep.mubr.bf16.mxu0 0
    %361 = vmatmul.mubr.bf16.gmra.mxu0 %v251
    %v362 = vpop.f32.mrf.mxu0
    %v363 = vadd.f32 %v134, %v362
    %v364 = vpop.f32.mrf.mxu0
    %v365 = vpop.f32.mrf.mxu0
    %v366 = vadd.f32 %v139, %v365
    %v367 = vpop.f32.mrf.mxu0
    %368 = vmatprep.mubr.bf16.mxu0 0
    %369 = vmatmul.mubr.bf16.gmra.mxu0 %v254
    %v370 = vpop.f32.mrf.mxu0
    %v371 = vadd.f32 %v144, %v370
    %v372 = vpop.f32.mrf.mxu0
    %v373 = vpop.f32.mrf.mxu0
    %v374 = vadd.f32 %v149, %v373
    %v375 = vpop.f32.mrf.mxu0
    %376 = vdwg.mxu0
    %vm377 = vcmp.gt.f32.partialorder %v315, 0.0
    %vm378 = vcmp.gt.f32.partialorder %v318, 0.0
    %vm379 = vcmp.gt.f32.partialorder %v323, 0.0
    %vm380 = vcmp.gt.f32.partialorder %v326, 0.0
    %vm381 = vcmp.gt.f32.partialorder %v331, 0.0
    %vm382 = vcmp.gt.f32.partialorder %v334, 0.0
    %vm383 = vcmp.gt.f32.partialorder %v339, 0.0
    %vm384 = vcmp.gt.f32.partialorder %v342, 0.0
    %vm385 = vcmp.gt.f32.partialorder %v347, 0.0
    %vm386 = vcmp.gt.f32.partialorder %v350, 0.0
    %vm387 = vcmp.gt.f32.partialorder %v355, 0.0
    %vm388 = vcmp.gt.f32.partialorder %v358, 0.0
    %vm389 = vcmp.gt.f32.partialorder %v363, 0.0
    %vm390 = vcmp.gt.f32.partialorder %v366, 0.0
    %vm391 = vcmp.gt.f32.partialorder %v371, 0.0
    %vm392 = vcmp.gt.f32.partialorder %v374, 0.0
    %v393 = vmul.f32 %v315, 0.01
    %v394 = vmul.f32 %v318, 0.01
    %v395 = vmul.f32 %v323, 0.01
    %v396 = vmul.f32 %v326, 0.01
    %v397 = vmul.f32 %v331, 0.01
    %v398 = vmul.f32 %v334, 0.01
    %v399 = vmul.f32 %v339, 0.01
    %v400 = vmul.f32 %v342, 0.01
    %v401 = vmul.f32 %v347, 0.01
    %v402 = vmul.f32 %v350, 0.01
    %v403 = vmul.f32 %v355, 0.01
    %v404 = vmul.f32 %v358, 0.01
    %v405 = vmul.f32 %v363, 0.01
    %v406 = vmul.f32 %v366, 0.01
    %v407 = vmul.f32 %v371, 0.01
    %v408 = vmul.f32 %v374, 0.01
    %v409 = vsel %vm377, %v315, %v393
    %v410 = vsel %vm378, %v318, %v394
    %v411 = vsel %vm379, %v323, %v395
    %v412 = vsel %vm380, %v326, %v396
    %v413 = vsel %vm381, %v331, %v397
    %v414 = vsel %vm382, %v334, %v398
    %v415 = vsel %vm383, %v339, %v399
    %v416 = vsel %vm384, %v342, %v400
    %v417 = vsel %vm385, %v347, %v401
    %v418 = vsel %vm386, %v350, %v402
    %v419 = vsel %vm387, %v355, %v403
    %v420 = vsel %vm388, %v358, %v404
    %v421 = vsel %vm389, %v363, %v405
    %v422 = vsel %vm390, %v366, %v406
    %v423 = vsel %vm391, %v371, %v407
    %v424 = vsel %vm392, %v374, %v408
    %v425 = vld [vmem:[%s3] sm:$0xf]
    %s426 = sld [smem:[#allocation2]]
    %v427 = vstv %s426
    %428 = vmatprep.subr.mxu0 0.0
    %429 = vmatpush1.msra.mxu0 %v424
    %430 = vmatprep.subr.mxu0 0.0
    %431 = vmatpush1.msra.mxu0 %v423
    %432 = vmatprep.subr.mxu0 0.0
    %433 = vmatpush1.msra.mxu0 %v422
    %434 = vmatprep.subr.mxu0 0.0
    %435 = vmatpush1.msra.mxu0 %v421
    %436 = vmatprep.subr.mxu0 0.0
    %437 = vmatpush1.msra.mxu0 %v420
    %438 = vmatprep.subr.mxu0 0.0
    %439 = vmatpush1.msra.mxu0 %v419
    %440 = vmatprep.subr.mxu0 0.0
    %441 = vmatpush1.msra.mxu0 %v418
    %442 = vmatprep.subr.mxu0 0.0
    %443 = vmatpush1.msra.mxu0 %v417
    %444 = vmatprep.subr.mxu0 0.0
    %445 = vmatpush1.msra.mxu0 %v416
    %446 = vmatprep.subr.mxu0 0.0
    %447 = vmatpush1.msra.mxu0 %v415
    %448 = vmatprep.subr.mxu0 0.0
    %449 = vmatpush1.msra.mxu0 %v414
    %450 = vmatprep.subr.mxu0 0.0
    %451 = vmatpush1.msra.mxu0 %v413
    %452 = vmatprep.subr.mxu0 0.0
    %453 = vmatpush1.msra.mxu0 %v412
    %454 = vmatprep.subr.mxu0 0.0
    %455 = vmatpush1.msra.mxu0 %v411
    %456 = vmatprep.subr.mxu0 0.0
    %457 = vmatpush1.msra.mxu0 %v410
    %458 = vmatprep.subr.mxu0 0.0
    %459 = vmatpush1.msra.mxu0 %v409
    %460 = vmatprep.subr.mxu0 0.0
    %461 = vmatpush2.msra.mxu0 0.0
    %462 = vmatprep.subr.mxu0 0.0
    %463 = vmatpush2.msra.mxu0 0.0
    %464 = vmatprep.subr.mxu0 0.0
    %465 = vmatpush2.msra.mxu0 0.0
    %466 = vmatprep.subr.mxu0 0.0
    %467 = vmatpush2.msra.mxu0 0.0
    %468 = vmatprep.subr.mxu0 0.0
    %469 = vmatpush2.msra.mxu0 0.0
    %470 = vmatprep.subr.mxu0 0.0
    %471 = vmatpush2.msra.mxu0 0.0
    %472 = vmatprep.subr.mxu0 0.0
    %473 = vmatpush2.msra.mxu0 0.0
    %474 = vmatprep.subr.mxu0 0.0
    %475 = vmatpush2.msra.mxu0 0.0
    %476 = vmatprep.subr.mxu0 0.0
    %477 = vmatpush2.msra.mxu0 0.0
    %478 = vmatprep.subr.mxu0 0.0
    %479 = vmatpush2.msra.mxu0 0.0
    %480 = vmatprep.subr.mxu0 0.0
    %481 = vmatpush2.msra.mxu0 0.0
    %482 = vmatprep.subr.mxu0 0.0
    %483 = vmatpush2.msra.mxu0 0.0
    %484 = vmatprep.subr.mxu0 0.0
    %485 = vmatpush2.msra.mxu0 0.0
    %486 = vmatprep.subr.mxu0 0.0
    %487 = vmatpush2.msra.mxu0 0.0
    %488 = vmatprep.subr.mxu0 0.0
    %489 = vmatpush2.msra.mxu0 0.0
    %490 = vmatprep.subr.mxu0 0.0
    %491 = vmatpush2.msra.mxu0 0.0
    %492 = vmatprep.mubr.f32.mxu0 0.0
    %493 = vmatmul.mubr.f32.gmra.mxu0 %v425
    %v494 = vpop.f32.mrf.mxu0
    %v495 = vadd.f32 %v427, %v494
    %v496 = vpop.f32.mrf.mxu0
    %497 = vdwg.mxu0
    %498 = vst [vmem:[#allocation3] sm:$0xf] %v495
    // Predicated region
    $region22: #{tpu_custom_call.1} parent=1 // pred_check
      _
    $region23: #{tpu_custom_call.1} parent=1 // pred_check_branch
      %500 = sbr.rel (0) target = $region25
    $region24: #{tpu_custom_call.1} parent=1 // pred_region
      %s502 = ssub.s32 64, 64
      %503 = vsyncadd [#allocation4], %s502
      %s505 = sshll.u32 [#allocation3], 4
      %s506 = int_to_ptr.vmem [resolvable:$true] %s505
      %508 = dma.vmem_to_hbm [thread:$0]  %s506, 64, %s5, [#allocation4]
    $region25: #{tpu_custom_call.1} parent=1 // pred_fallthru
      _
    // Predicated region
    $region26: #{tpu_custom_call.1} parent=1 // pred_check
      _
    $region27: #{tpu_custom_call.1} parent=1 // pred_check_branch
      %510 = sbr.rel (0) target = $region29
    $region28: #{tpu_custom_call.1} parent=1 // pred_region
      %511 = dma.done [#allocation4], 64
    $region29: #{tpu_custom_call.1} parent=1 // pred_fallthru
      _
    %512 = vsyncpa [#allocation4], 1

</llo_original>
